<compile_context>
chip_gen: v5e
topology: v5e:2x2
jax: 0.10.0
libtpu: 0.0.40
codegen_flags: <defaults>
</compile_context>

<pallas_src>
import functools

import jax
import jax.numpy as jnp
from jax.experimental import pallas as pl
from jax.experimental.pallas import tpu as pltpu


def _round_up(x, m):
    return ((x + m - 1) // m) * m


def _tensorcores_per_chip():
    """Best effort: megacore-style chips (v4 / v7x) expose 2 TCs per device."""
    try:
        kind = jax.devices()[0].device_kind.lower()
    except Exception:
        return 1
    return 2 if ("v7" in kind or "v4" in kind) else 1


def decoder_kernel(feat_ref, boxes_ref, slab_ref, out_ref, pooled_ref,
                   *, C, Cp, Hp, Dp):
    """Grid = (batch steps [parallel], HW chunks [arbitrary]).

    feat_ref  : (BB, C, hw_chunk)       features (bf16 by default), lanes = H*W chunk
    boxes_ref : (BB, Np, 4)  f32        noisy boxes
    slab_ref  : (Cp + 16 + 2*Hp, Lw)    packed params (bf16 by default), VMEM-resident
    out_ref   : (BB, Np, Dp) f32        fused [boxes | logits | zero-pad] output
    pooled_ref: (BB, C)      f32        running spatial SUM (scratch accumulator)
    """
    h = pl.program_id(1)
    last_h = pl.num_programs(1) - 1

    # ---- spatial pooling: lane-reduce each HW chunk, accumulate in f32 ------
    # (the mean's 1/HW factor is folded into the fc1 weight rows at pack time)
    @pl.when(h == 0)
    def _():
        pooled_ref[...] = jnp.zeros_like(pooled_ref)

    pooled_ref[...] += jnp.sum(feat_ref[...].astype(jnp.float32), axis=-1)

    # ---- last HW chunk: MLP + fused heads + output store --------------------
    @pl.when(h == last_h)
    def _():
        BB, Np, _ = boxes_ref.shape
        cdt = slab_ref.dtype                                   # MXU operand dtype

        # static views into the packed parameter slab (single VMEM-resident copy)
        w1f = slab_ref[0:C, :Hp]                               # fc1 pooled part (pre-scaled by 1/HW)
        w1b = slab_ref[Cp:Cp + 8, :Hp].astype(jnp.float32)     # fc1 box part, rows 0..3
        bias_blk = slab_ref[Cp + 8:Cp + 16, :]
        b1 = bias_blk[0:1, :Hp].astype(jnp.float32)
        b2 = bias_blk[1:2, :Hp].astype(jnp.float32)
        bhead = bias_blk[2:3, :Dp].astype(jnp.float32)
        w2 = slab_ref[Cp + 16:Cp + 16 + Hp, :Hp]
        whead = slab_ref[Cp + 16 + Hp:Cp + 16 + 2 * Hp, :Dp]   # [box_head | cls_head]

        pooled = pooled_ref[...]                               # (BB, C) f32 spatial sums
        h_feat = jnp.dot(pooled.astype(cdt), w1f,
                         preferred_element_type=jnp.float32)   # (BB, Hp)

        # K=4 box term as 4 VPU broadcast FMAs (boxes kept in f32).
        # TODO(synk): confirm in the bundle dump these lower as XLU broadcasts;
        # if they round-trip through VMEM, switch to a K=8 bf16 MXU matmul.
        boxes = boxes_ref[...]                                 # (BB, Np, 4)
        h_box = (boxes[..., 0:1] * w1b[0:1, :]
                 + boxes[..., 1:2] * w1b[1:2, :]
                 + boxes[..., 2:3] * w1b[2:3, :]
                 + boxes[..., 3:4] * w1b[3:4, :])              # (BB, Np, Hp)

        h1 = jnp.maximum(h_feat[:, None, :] + h_box + b1, 0.0) # (BB, Np, Hp)
        h1 = h1.reshape(BB * Np, Hp)

        h2 = jnp.dot(h1.astype(cdt), w2,
                     preferred_element_type=jnp.float32) + b2
        h2 = jnp.maximum(h2, 0.0)                              # (BB*Np, Hp)

        out = jnp.dot(h2.astype(cdt), whead,
                      preferred_element_type=jnp.float32) + bhead
        out_ref[...] = out.reshape(BB, Np, Dp).astype(out_ref.dtype)


def detection_decoder(noisy_boxes, features, params, *,
                      batch_block=None, hw_chunk=None,
                      feat_dtype=jnp.bfloat16, param_dtype=jnp.bfloat16,
                      vmem_budget_bytes=24 * 2**20):
    """noisy_boxes: (B, N, 4) f32; features: (B, C, H, W) f32 (NCHW, like PyTorch).

    feat_dtype / param_dtype default to bf16 (mem-bound feature read + native
    MXU dtype).  Pass jnp.float32 for a numerically exact path.  On v5e, if
    bf16 feature pooling ever binds on the VPU, pass feat_dtype=jnp.float32.
    """
    B, N, _ = noisy_boxes.shape
    _, C, H, W = features.shape
    HW = H * W

    W1, b1, W2, b2, Wb, bb, Wc, bc = params       # PyTorch Linear: (out, in)
    hidden = W1.shape[0]
    num_classes = Wc.shape[0]
    assert W1.shape[1] == C + 4, "fc1 expects input dim C + 4 (C must equal hidden_dim)"

    # Padded sizes: lane-dense activations/weights, sublane-aligned rows.
    Hp = _round_up(hidden, 128)                   # hidden, lane-padded
    Dout = 4 + num_classes
    Dp = _round_up(Dout, 128)                     # fused head width, lane-padded
    Lw = max(Hp, Dp)                              # slab lane width
    Cp = _round_up(C, 8)
    Np = _round_up(N, 8)

    # ---- pack every parameter into one lane-padded slab (param_dtype) -------
    def pad2(a, rows, cols):
        a = jnp.asarray(a, jnp.float32)
        return jnp.pad(a, ((0, rows - a.shape[0]), (0, cols - a.shape[1])))

    w1t = jnp.asarray(W1, jnp.float32).T          # (C+4, hidden)
    slab = jnp.concatenate([
        pad2(w1t[:C] * (1.0 / HW), Cp, Lw),                               # fc1 pooled part (mean folded in)
        pad2(w1t[C:], 8, Lw),                                             # fc1 boxes part
        pad2(jnp.stack([
            jnp.pad(jnp.asarray(b1, jnp.float32), (0, Lw - hidden)),
            jnp.pad(jnp.asarray(b2, jnp.float32), (0, Lw - hidden)),
            jnp.pad(jnp.concatenate([jnp.asarray(bb, jnp.float32),
                                     jnp.asarray(bc, jnp.float32)]),
                    (0, Lw - Dout)),
        ]), 8, Lw),                                                       # b1 / b2 / [bb|bc]
        pad2(jnp.asarray(W2, jnp.float32).T, Hp, Lw),                     # fc2
        pad2(jnp.concatenate([jnp.asarray(Wb, jnp.float32).T,
                              jnp.asarray(Wc, jnp.float32).T], axis=1),
             Hp, Lw),                                                     # fused heads
    ], axis=0).astype(param_dtype)

    # ---- inputs: NCHW -> (B, C, HW) is a free reshape (no transpose) --------
    feats = features.reshape(B, C, HW).astype(feat_dtype)
    boxes = jnp.asarray(noisy_boxes, jnp.float32)
    if Np != N:
        boxes = jnp.pad(boxes, ((0, 0), (0, Np - N), (0, 0)))

    # ---- HW chunking: 'arbitrary' reduction axis for the pooled sum ---------
    if hw_chunk is None:
        hw_chunk = min(_round_up(HW, 128), 2048)
    if hw_chunk % 128 != 0 or HW % hw_chunk != 0:
        # TODO(synk): zero-pad HW (harmless for a SUM accumulation) instead of
        # falling back to one full-HW block when HW is not a multiple of 128.
        hw_chunk = HW
    hw_steps = HW // hw_chunk

    # ---- batch_block: generation-aware + explicit VMEM budget ----------------
    feat_isize = jnp.dtype(feat_dtype).itemsize
    slab_bytes = slab.shape[0] * slab.shape[1] * jnp.dtype(param_dtype).itemsize

    def vmem_need(bb_):
        feat_blk = bb_ * C * hw_chunk * feat_isize
        out_blk = bb_ * Np * Dp * 4
        box_blk = bb_ * Np * 4 * 4
        scratch = bb_ * C * 4
        return 2 * feat_blk + 2 * out_blk + 2 * box_blk + slab_bytes + scratch

    if batch_block is None:
        want_two_steps = _tensorcores_per_chip() >= 2 and B >= 2
        divisors = [d for d in range(1, B + 1) if B % d == 0]
        fitting = [d for d in divisors if vmem_need(d) <= vmem_budget_bytes] or [1]
        if want_two_steps:
            multi = [d for d in fitting if B // d >= 2]
            batch_block = max(multi) if multi else max(fitting)
        else:
            batch_block = max(fitting)
    assert B % batch_block == 0
    grid = (B // batch_block, hw_steps)

    vmem_limit = int(min(48 * 2**20, max(16 * 2**20, 2 * vmem_need(batch_block))))

    kernel = functools.partial(decoder_kernel, C=C, Cp=Cp, Hp=Hp, Dp=Dp)

    out = pl.pallas_call(
        kernel,
        out_shape=jax.ShapeDtypeStruct((B, Np, Dp), jnp.float32),
        grid_spec=pltpu.PrefetchScalarGridSpec(
            num_scalar_prefetch=0,
            grid=grid,
            in_specs=[
                pl.BlockSpec((batch_block, C, hw_chunk), lambda b, h: (b, 0, h)),  # feats
                pl.BlockSpec((batch_block, Np, 4), lambda b, h: (b, 0, 0)),        # boxes
                # constant parameter slab: whole array, VMEM-resident, single copy
                pl.BlockSpec(memory_space=pltpu.MemorySpace.VMEM),
            ],
            out_specs=pl.BlockSpec((batch_block, Np, Dp), lambda b, h: (b, 0, 0)),
            scratch_shapes=[pltpu.VMEM((batch_block, C), jnp.float32)],
        ),
        compiler_params=pltpu.CompilerParams(
            dimension_semantics=("parallel", "arbitrary"),
            vmem_limit_bytes=vmem_limit),
    )(feats, boxes, slab)

    # TODO(synk): for large N consider a bf16 fused output (or returning the
    # padded slab) to avoid the two XLA slice copies below.
    pred_boxes = out[:, :N, :4]
    pred_logits = out[:, :N, 4:4 + num_classes]
    return pred_boxes, pred_logits


def init_params(key, hidden_dim, num_classes):
    """Deterministic synthetic params; PyTorch Linear weight shape is (out, in)."""
    ks = jax.random.split(key, 8)
    scale = 0.05
    W1 = scale * jax.random.normal(ks[0], (hidden_dim, 4 + hidden_dim), jnp.float32)
    b1 = scale * jax.random.normal(ks[1], (hidden_dim,), jnp.float32)
    W2 = scale * jax.random.normal(ks[2], (hidden_dim, hidden_dim), jnp.float32)
    b2 = scale * jax.random.normal(ks[3], (hidden_dim,), jnp.float32)
    Wb = scale * jax.random.normal(ks[4], (4, hidden_dim), jnp.float32)
    bb = scale * jax.random.normal(ks[5], (4,), jnp.float32)
    Wc = scale * jax.random.normal(ks[6], (num_classes, hidden_dim), jnp.float32)
    bc = scale * jax.random.normal(ks[7], (num_classes,), jnp.float32)
    return (W1, b1, W2, b2, Wb, bb, Wc, bc)


def reference_decoder(noisy_boxes, features, params):
    """Pure-JAX reference mirroring the PyTorch forward exactly."""
    W1, b1, W2, b2, Wb, bb, Wc, bc = params
    B, N, _ = noisy_boxes.shape
    pooled = features.mean(axis=(2, 3))                        # (B, C)
    pooled = jnp.broadcast_to(pooled[:, None, :], (B, N, pooled.shape[-1]))
    x = jnp.concatenate([pooled, noisy_boxes], axis=-1)        # (B, N, C+4)
    x = x.reshape(-1, x.shape[-1])
    x = jnp.maximum(x @ W1.T + b1, 0.0)
    x = jnp.maximum(x @ W2.T + b2, 0.0)
    x = x.reshape(B, N, -1)
    return x @ Wb.T + bb, x @ Wc.T + bc


if __name__ == "__main__":
    B, N = 2, 8
    hidden_dim = 32          # channel dim C must equal hidden_dim for fc1 to typecheck
    num_classes = 3
    C, H, W = hidden_dim, 16, 16

    key = jax.random.PRNGKey(0)
    k_box, k_feat, k_par = jax.random.split(key, 3)
    noisy_boxes = jax.random.uniform(k_box, (B, N, 4), jnp.float32)
    features = jax.random.normal(k_feat, (B, C, H, W), jnp.float32)
    params = init_params(k_par, hidden_dim, num_classes)

    ref_boxes, ref_logits = reference_decoder(noisy_boxes, features, params)

    # 1) exact f32 path (hw_chunk=128 -> 2 chunks, exercises the accumulator)
    fb32, fl32 = detection_decoder(noisy_boxes, features, params,
                                   feat_dtype=jnp.float32,
                                   param_dtype=jnp.float32,
                                   hw_chunk=128)
    fb32, fl32 = jax.block_until_ready((fb32, fl32))
    assert fb32.shape == (B, N, 4)
    assert fl32.shape == (B, N, num_classes)
    assert jnp.allclose(fb32, ref_boxes, atol=1e-4, rtol=1e-4)
    assert jnp.allclose(fl32, ref_logits, atol=1e-4, rtol=1e-4)

    # 2) default bf16 fast path (looser tolerance for the bf16 casts)
    pred_boxes, pred_logits = detection_decoder(noisy_boxes, features, params,
                                                hw_chunk=128)
    pred_boxes, pred_logits = jax.block_until_ready((pred_boxes, pred_logits))
    assert pred_boxes.shape == (B, N, 4)
    assert pred_logits.shape == (B, N, num_classes)
    assert jnp.allclose(pred_boxes, ref_boxes, atol=3e-2, rtol=3e-2)
    assert jnp.allclose(pred_logits, ref_logits, atol=3e-2, rtol=3e-2)

    print("KERNEL_OK")
</pallas_src>

<mosaic_0001>
module attributes {stable_mosaic.version = 11 : i64} {
  func.func @decoder_kernel(%arg0: i32, %arg1: i32, %arg2: memref<2x32x128xf32, #tpu.memory_space<vmem>>, %arg3: memref<2x8x4xf32, #tpu.memory_space<vmem>>, %arg4: memref<304x128xf32, #tpu.memory_space<vmem>>, %arg5: memref<2x8x128xf32, #tpu.memory_space<vmem>>, %arg6: memref<2x32xf32, #tpu.memory_space<vmem>>) attributes {dimension_semantics = [#tpu.dimension_semantics<parallel>, #tpu.dimension_semantics<arbitrary>], iteration_bounds = array<i64: 1, 2>, scalar_prefetch = 0 : i64, scratch_operands = 1 : i64, tpu.core_type = #tpu.core_type<tc>, window_params = [{transform_indices = @transform_0, window_bounds = array<i64: 2, 32, 128>}, {transform_indices = @transform_1, window_bounds = array<i64: 2, 8, 4>}, {pipeline_mode = #tpu.pipeline_mode<synchronous>, transform_indices = @transform_2, window_bounds = array<i64: 304, 128>}, {transform_indices = @transform_3, window_bounds = array<i64: 2, 8, 128>}]} {
    %c0_i32 = arith.constant 0 : i32
    %0 = arith.cmpi eq, %arg1, %c0_i32 : i32
    %1 = arith.extui %0 : i1 to i32
    %c0_i32_0 = arith.constant 0 : i32
    %2 = arith.cmpi ne, %1, %c0_i32_0 : i32
    scf.if %2 {
      %cst_8 = arith.constant 0.000000e+00 : f32
      %11 = vector.broadcast %cst_8 : f32 to vector<2x32xf32>
      %c0_9 = arith.constant 0 : index
      %c0_10 = arith.constant 0 : index
      %12 = vector.load %arg6[%c0_9, %c0_10] : memref<2x32xf32, #tpu.memory_space<vmem>>, vector<2x32xf32>
      tpu.vector_store %arg6[%c0_9, %c0_10], %11 {strides = array<i32>} : memref<2x32xf32, #tpu.memory_space<vmem>>, vector<2x32xf32>,
    } else {
    }
    %c0 = arith.constant 0 : index
    %c0_1 = arith.constant 0 : index
    %3 = vector.load %arg6[%c0, %c0_1] : memref<2x32xf32, #tpu.memory_space<vmem>>, vector<2x32xf32>
    %c0_2 = arith.constant 0 : index
    %c0_3 = arith.constant 0 : index
    %c0_4 = arith.constant 0 : index
    %4 = vector.load %arg2[%c0_2, %c0_3, %c0_4] : memref<2x32x128xf32, #tpu.memory_space<vmem>>, vector<2x32x128xf32>
    %cst = arith.constant dense<0.000000e+00> : vector<2x32xf32>
    %5 = vector.multi_reduction <add>, %4, %cst [2] : vector<2x32x128xf32> to vector<2x32xf32>
    %6 = arith.addf %3, %5 : vector<2x32xf32>
    %c0_5 = arith.constant 0 : index
    %c0_6 = arith.constant 0 : index
    %7 = vector.load %arg6[%c0_5, %c0_6] : memref<2x32xf32, #tpu.memory_space<vmem>>, vector<2x32xf32>
    tpu.vector_store %arg6[%c0_5, %c0_6], %6 {strides = array<i32>} : memref<2x32xf32, #tpu.memory_space<vmem>>, vector<2x32xf32>,
    %c1_i32 = arith.constant 1 : i32
    %8 = arith.cmpi eq, %arg1, %c1_i32 : i32
    %9 = arith.extui %8 : i1 to i32
    %c0_i32_7 = arith.constant 0 : i32
    %10 = arith.cmpi ne, %9, %c0_i32_7 : i32
    scf.if %10 {
      %c0_8 = arith.constant 0 : index
      %c0_9 = arith.constant 0 : index
      %11 = vector.load %arg4[%c0_8, %c0_9] : memref<304x128xf32, #tpu.memory_space<vmem>>, vector<32x128xf32>
      %c32 = arith.constant 32 : index
      %c0_10 = arith.constant 0 : index
      %12 = vector.load %arg4[%c32, %c0_10] : memref<304x128xf32, #tpu.memory_space<vmem>>, vector<8x128xf32>
      %c40 = arith.constant 40 : index
      %c0_11 = arith.constant 0 : index
      %13 = vector.load %arg4[%c40, %c0_11] : memref<304x128xf32, #tpu.memory_space<vmem>>, vector<8x128xf32>
      %14 = vector.extract_strided_slice %13 {offsets = [0, 0], sizes = [1, 128], strides = [1, 1]} : vector<8x128xf32> to vector<1x128xf32>
      %15 = vector.extract_strided_slice %13 {offsets = [1, 0], sizes = [1, 128], strides = [1, 1]} : vector<8x128xf32> to vector<1x128xf32>
      %16 = vector.extract_strided_slice %13 {offsets = [2, 0], sizes = [1, 128], strides = [1, 1]} : vector<8x128xf32> to vector<1x128xf32>
      %c48 = arith.constant 48 : index
      %c0_12 = arith.constant 0 : index
      %17 = vector.load %arg4[%c48, %c0_12] : memref<304x128xf32, #tpu.memory_space<vmem>>, vector<128x128xf32>
      %c176 = arith.constant 176 : index
      %c0_13 = arith.constant 0 : index
      %18 = vector.load %arg4[%c176, %c0_13] : memref<304x128xf32, #tpu.memory_space<vmem>>, vector<128x128xf32>
      %c0_14 = arith.constant 0 : index
      %c0_15 = arith.constant 0 : index
      %19 = vector.load %arg6[%c0_14, %c0_15] : memref<2x32xf32, #tpu.memory_space<vmem>>, vector<2x32xf32>
      %cst_16 = arith.constant dense<0.000000e+00> : vector<2x128xf32>
      %20 = tpu.matmul %19, %11, %cst_16 {dimension_numbers = #tpu.dot_dimension_numbers<[1], [0], [0], [1], [0, 0, 1, 1], [], []>} : vector<2x32xf32>, vector<32x128xf32>, vector<2x128xf32> -> vector<2x128xf32>
      %c0_17 = arith.constant 0 : index
      %c0_18 = arith.constant 0 : index
      %c0_19 = arith.constant 0 : index
      %21 = vector.load %arg3[%c0_17, %c0_18, %c0_19] : memref<2x8x4xf32, #tpu.memory_space<vmem>>, vector<2x8x4xf32>
      %22 = vector.extract_strided_slice %21 {offsets = [0, 0, 0], sizes = [2, 8, 1], strides = [1, 1, 1]} : vector<2x8x4xf32> to vector<2x8x1xf32>
      %23 = vector.extract_strided_slice %12 {offsets = [0, 0], sizes = [1, 128], strides = [1, 1]} : vector<8x128xf32> to vector<1x128xf32>
      %24 = vector.shape_cast %23 : vector<1x128xf32> to vector<1x1x128xf32>
      %25 = vector.broadcast %22 : vector<2x8x1xf32> to vector<2x8x128xf32>
      %26 = vector.broadcast %24 : vector<1x1x128xf32> to vector<2x8x128xf32>
      %27 = arith.mulf %25, %26 : vector<2x8x128xf32>
      %28 = vector.extract_strided_slice %21 {offsets = [0, 0, 1], sizes = [2, 8, 1], strides = [1, 1, 1]} : vector<2x8x4xf32> to vector<2x8x1xf32>
      %29 = vector.extract_strided_slice %12 {offsets = [1, 0], sizes = [1, 128], strides = [1, 1]} : vector<8x128xf32> to vector<1x128xf32>
      %30 = vector.shape_cast %29 : vector<1x128xf32> to vector<1x1x128xf32>
      %31 = vector.broadcast %28 : vector<2x8x1xf32> to vector<2x8x128xf32>
      %32 = vector.broadcast %30 : vector<1x1x128xf32> to vector<2x8x128xf32>
      %33 = arith.mulf %31, %32 : vector<2x8x128xf32>
      %34 = arith.addf %27, %33 : vector<2x8x128xf32>
      %35 = vector.extract_strided_slice %21 {offsets = [0, 0, 2], sizes = [2, 8, 1], strides = [1, 1, 1]} : vector<2x8x4xf32> to vector<2x8x1xf32>
      %36 = vector.extract_strided_slice %12 {offsets = [2, 0], sizes = [1, 128], strides = [1, 1]} : vector<8x128xf32> to vector<1x128xf32>
      %37 = vector.shape_cast %36 : vector<1x128xf32> to vector<1x1x128xf32>
      %38 = vector.broadcast %35 : vector<2x8x1xf32> to vector<2x8x128xf32>
      %39 = vector.broadcast %37 : vector<1x1x128xf32> to vector<2x8x128xf32>
      %40 = arith.mulf %38, %39 : vector<2x8x128xf32>
      %41 = arith.addf %34, %40 : vector<2x8x128xf32>
      %42 = vector.extract_strided_slice %21 {offsets = [0, 0, 3], sizes = [2, 8, 1], strides = [1, 1, 1]} : vector<2x8x4xf32> to vector<2x8x1xf32>
      %43 = vector.extract_strided_slice %12 {offsets = [3, 0], sizes = [1, 128], strides = [1, 1]} : vector<8x128xf32> to vector<1x128xf32>
      %44 = vector.shape_cast %43 : vector<1x128xf32> to vector<1x1x128xf32>
      %45 = vector.broadcast %42 : vector<2x8x1xf32> to vector<2x8x128xf32>
      %46 = vector.broadcast %44 : vector<1x1x128xf32> to vector<2x8x128xf32>
      %47 = arith.mulf %45, %46 : vector<2x8x128xf32>
      %48 = arith.addf %41, %47 : vector<2x8x128xf32>
      %49 = vector.shape_cast %20 : vector<2x128xf32> to vector<2x1x128xf32>
      %50 = vector.broadcast %49 : vector<2x1x128xf32> to vector<2x8x128xf32>
      %51 = arith.addf %50, %48 : vector<2x8x128xf32>
      %52 = vector.shape_cast %14 : vector<1x128xf32> to vector<1x1x128xf32>
      %53 = vector.broadcast %52 : vector<1x1x128xf32> to vector<2x8x128xf32>
      %54 = arith.addf %51, %53 : vector<2x8x128xf32>
      %cst_20 = arith.constant 0.000000e+00 : f32
      %55 = vector.broadcast %cst_20 : f32 to vector<2x8x128xf32>
      %56 = arith.maximumf %54, %55 : vector<2x8x128xf32>
      %57 = vector.shape_cast %56 : vector<2x8x128xf32> to vector<16x128xf32>
      %cst_21 = arith.constant dense<0.000000e+00> : vector<16x128xf32>
      %58 = tpu.matmul %57, %17, %cst_21 {dimension_numbers = #tpu.dot_dimension_numbers<[1], [0], [0], [1], [0, 0, 1, 1], [], []>} : vector<16x128xf32>, vector<128x128xf32>, vector<16x128xf32> -> vector<16x128xf32>
      %59 = vector.broadcast %15 : vector<1x128xf32> to vector<16x128xf32>
      %60 = arith.addf %58, %59 : vector<16x128xf32>
      %cst_22 = arith.constant 0.000000e+00 : f32
      %61 = vector.broadcast %cst_22 : f32 to vector<16x128xf32>
      %62 = arith.maximumf %60, %61 : vector<16x128xf32>
      %cst_23 = arith.constant dense<0.000000e+00> : vector<16x128xf32>
      %63 = tpu.matmul %62, %18, %cst_23 {dimension_numbers = #tpu.dot_dimension_numbers<[1], [0], [0], [1], [0, 0, 1, 1], [], []>} : vector<16x128xf32>, vector<128x128xf32>, vector<16x128xf32> -> vector<16x128xf32>
      %64 = vector.broadcast %16 : vector<1x128xf32> to vector<16x128xf32>
      %65 = arith.addf %63, %64 : vector<16x128xf32>
      %66 = vector.shape_cast %65 : vector<16x128xf32> to vector<2x8x128xf32>
      %c0_24 = arith.constant 0 : index
      %c0_25 = arith.constant 0 : index
      %c0_26 = arith.constant 0 : index
      %67 = vector.load %arg5[%c0_24, %c0_25, %c0_26] : memref<2x8x128xf32, #tpu.memory_space<vmem>>, vector<2x8x128xf32>
      tpu.vector_store %arg5[%c0_24, %c0_25, %c0_26], %66 {strides = array<i32>} : memref<2x8x128xf32, #tpu.memory_space<vmem>>, vector<2x8x128xf32>,
    } else {
    }
    return
  }
  func.func @transform_0(%arg0: i32, %arg1: i32) -> (i32, i32, i32) {
    %c0_i32 = arith.constant 0 : i32
    %c0_i32_0 = arith.constant 0 : i32
    return %arg0, %c0_i32, %arg1 : i32, i32, i32
  }
  func.func @transform_1(%arg0: i32, %arg1: i32) -> (i32, i32, i32) {
    %c0_i32 = arith.constant 0 : i32
    %c0_i32_0 = arith.constant 0 : i32
    %c0_i32_1 = arith.constant 0 : i32
    return %arg0, %c0_i32, %c0_i32_0 : i32, i32, i32
  }
  func.func @transform_2(%arg0: i32, %arg1: i32) -> (i32, i32) {
    %c0_i32 = arith.constant 0 : i32
    %c0_i32_0 = arith.constant 0 : i32
    %c0_i32_1 = arith.constant 0 : i32
    return %c0_i32, %c0_i32_0 : i32, i32
  }
  func.func @transform_3(%arg0: i32, %arg1: i32) -> (i32, i32, i32) {
    %c0_i32 = arith.constant 0 : i32
    %c0_i32_0 = arith.constant 0 : i32
    %c0_i32_1 = arith.constant 0 : i32
    return %arg0, %c0_i32, %c0_i32_0 : i32, i32, i32
  }
}

</mosaic_0001>

<llo_original>
// kernel: tpu_custom_call.1
$region0: #{tpu_custom_call.1}
  #allocation0 [shape = 'u32[]', space=smem, size = 0x4, offset = 0x4, fixed_abs, tag = 'smem constant byte address 0x4 - core index']
  #allocation1 [shape = 'u32[72,128]{1,0:T(1,128)}', space=vmem, size = 0x9000, scoped, tag = 'internal scratch']
  #allocation2 [shape = 'f32[2,32]{1,0:T(2,128)}', space=vmem, size = 0x400, scoped, tag = 'scratch operand']
  %s0 = inlined_call_operand.hbm [shape: f32[2,32,256], index: 0, kind: input, shape index: {}]
  %s1 = inlined_call_operand.vmem [shape: f32[2,8,4], index: 1, kind: input, shape index: {}]
  %s2 = inlined_call_operand.hbm [shape: f32[304,128], index: 2, kind: input, shape index: {}]
  %s3 = inlined_call_operand.hbm [shape: f32[2,8,128], index: 3, kind: output, shape index: {}]
  %s4 = sld [smem:[#allocation0]]
  $region61: #{tpu_custom_call.1} parent=0
    _
  %s6 = ssub.s32 1, %s4
  %s7 = scalar_select 0, %s6, %s4
  $region1: #{tpu_custom_call.1} parent=0
    #allocation3 [shape = 'u8[65536]{0}', space=vmem, size = 0x10000, scoped, tag = 'input window, operand 0']
    #allocation4 [shape = 's32[2]{0}', space=sflag, size = 0x8, scoped, tag = 'scoped memory for tpu_custom_call.1']
    #allocation5 [shape = 's32[2]{0}', space=sflag, size = 0x8, scoped, tag = 'scoped memory for tpu_custom_call.1']
    #allocation6 [shape = 'u8[155648]{0}', space=vmem, size = 0x26000, scoped, tag = 'input window, operand 2, single buffered']
    #allocation7 [shape = 's32[1]{0}', space=sflag, size = 0x4, scoped, tag = 'scoped memory for tpu_custom_call.1']
    #allocation8 [shape = 'u8[8192]{0}', space=vmem, size = 0x2000, scoped, tag = 'output window, operand 0, single buffered']
    %8 = vsyncpa [#allocation4], 0
    %s9 = scalar_lea.sflag [#allocation4], 1
    %10 = vsyncpa %s9, 0
    %11 = vsyncpa [#allocation7], 0
    %12 = vsyncpa [#allocation5], 0
    loop: start=0, step=1, limit=4
    $region2: #{tpu_custom_call.1} parent=1 // loop_pre_header
      _
    $region3: #{tpu_custom_call.1} parent=1 // loop_header
      %s14 = sphi 0, %s18
      %p15 = scmp.ge.s32.totalorder %s14, 4
      %s21 = sphi 0, %s33
      %s22 = sphi 0, %s29
      %s23 = sphi 0, %s21
      %s24 = sphi 0, %s22
      %s25 = sphi 0, %s23
      %s26 = sphi 0, %s24
      %s38 = sphi 0, %s40
      %s41 = sphi 0, %s38
      %s42 = sphi 0, %s41
      %s58 = sphi 0, %s42
      %s64 = sphi 0, %s66
      %s67 = sphi 0, %s64
      %s68 = sphi 0, %s67
      %s84 = sphi 0, %s68
      %s88 = sphi 0, %s88
      %s90 = sphi 0, %s88
      %s91 = sphi 0, %s90
      %s105 = sphi 0, %s91
      %s111 = sphi 0, %s113
      %s114 = sphi 0, %s111
      %s115 = sphi 0, %s114
      %s131 = sphi 0, %s115
    $region4: #{tpu_custom_call.1} parent=1 // loop_header_branch
      %17 = sbr.rel (%p15) target = $region8
    $region5: #{tpu_custom_call.1} parent=1 // loop_body
      %s19 = ssub.s32 %s14, 1
      %s20 = ssub.s32 %s14, 2
      %s27 = sadd.s32 1, %s22
      %p28 = scmp.ge.s32.totalorder %s27, 2
      %s29 = scalar_select %p28, 0, %s27
      %s30 = sadd.s32 1, %s21
      %s31 = scalar_select %p28, %s30, %s21
      %p32 = scmp.ge.s32.totalorder %s31, 1
      %s33 = scalar_select %p32, 0, %s31
      %s34 = ssub.s32 %s21, %s33
      %s35 = ssub.s32 %s22, %s29
      %s36 = sor.u32 %s34, %s35
      %p37 = scmp.eq.s32.totalorder %s36, 0
      %s39 = sadd.s32 %s38, 1
      %s40 = scalar_select %p37, %s38, %s39
      %p43 = pneg %p37
      %p44 = scmp.eq.s32.totalorder %s14, 1
      %p45 = por %p43, %p44
      %p46 = scmp.ne.s32.totalorder %s38, %s41
      %p47 = scmp.eq.s32.totalorder %s14, 0
      %p48 = por %p46, %p47
      %p49 = scmp.ne.s32.totalorder %s38, %s41
      %p50 = scmp.eq.s32.totalorder %s19, 1
      %p51 = por %p49, %p50
      %p52 = scmp.ne.s32.totalorder %s41, %s42
      %p53 = scmp.eq.s32.totalorder %s19, 0
      %p54 = por %p52, %p53
      %p55 = scmp.ne.s32.totalorder %s41, %s42
      %p56 = scmp.eq.s32.totalorder %s20, 1
      %p57 = por %p55, %p56
      %p59 = scmp.ne.s32.totalorder %s42, %s58
      %p60 = scmp.eq.s32.totalorder %s20, 0
      %p61 = por %p59, %p60
      %s62 = ssub.s32 %s21, %s33
      %p63 = scmp.eq.s32.totalorder %s62, 0
      %s65 = sadd.s32 %s64, 1
      %s66 = scalar_select %p63, %s64, %s65
      %p69 = pneg %p63
      %p70 = scmp.eq.s32.totalorder %s14, 1
      %p71 = por %p69, %p70
      %p72 = scmp.ne.s32.totalorder %s64, %s67
      %p73 = scmp.eq.s32.totalorder %s14, 0
      %p74 = por %p72, %p73
      %p75 = scmp.ne.s32.totalorder %s64, %s67
      %p76 = scmp.eq.s32.totalorder %s19, 1
      %p77 = por %p75, %p76
      %p78 = scmp.ne.s32.totalorder %s67, %s68
      %p79 = scmp.eq.s32.totalorder %s19, 0
      %p80 = por %p78, %p79
      %p81 = scmp.ne.s32.totalorder %s67, %s68
      %p82 = scmp.eq.s32.totalorder %s20, 1
      %p83 = por %p81, %p82
      %p85 = scmp.ne.s32.totalorder %s68, %s84
      %p86 = scmp.eq.s32.totalorder %s20, 0
      %p87 = por %p85, %p86
      %s89 = sadd.s32 %s88, 1
      %p92 = scmp.eq.s32.totalorder %s14, 1
      %p93 = scmp.ne.s32.totalorder %s88, %s90
      %p94 = scmp.eq.s32.totalorder %s14, 0
      %p95 = por %p93, %p94
      %p96 = scmp.ne.s32.totalorder %s88, %s90
      %p97 = scmp.eq.s32.totalorder %s19, 1
      %p98 = por %p96, %p97
      %p99 = scmp.ne.s32.totalorder %s90, %s91
      %p100 = scmp.eq.s32.totalorder %s19, 0
      %p101 = por %p99, %p100
      %p102 = scmp.ne.s32.totalorder %s90, %s91
      %p103 = scmp.eq.s32.totalorder %s20, 1
      %p104 = por %p102, %p103
      %p106 = scmp.ne.s32.totalorder %s91, %s105
      %p107 = scmp.eq.s32.totalorder %s20, 0
      %p108 = por %p106, %p107
      %s109 = ssub.s32 %s21, %s33
      %p110 = scmp.eq.s32.totalorder %s109, 0
      %s112 = sadd.s32 %s111, 1
      %s113 = scalar_select %p110, %s111, %s112
      %p116 = pneg %p110
      %p117 = scmp.eq.s32.totalorder %s14, 1
      %p118 = por %p116, %p117
      %p119 = scmp.ne.s32.totalorder %s111, %s114
      %p120 = scmp.eq.s32.totalorder %s14, 0
      %p121 = por %p119, %p120
      %p122 = scmp.ne.s32.totalorder %s111, %s114
      %p123 = scmp.eq.s32.totalorder %s19, 1
      %p124 = por %p122, %p123
      %p125 = scmp.ne.s32.totalorder %s114, %s115
      %p126 = scmp.eq.s32.totalorder %s19, 0
      %p127 = por %p125, %p126
      %p128 = scmp.ne.s32.totalorder %s114, %s115
      %p129 = scmp.eq.s32.totalorder %s20, 1
      %p130 = por %p128, %p129
      %p132 = scmp.ne.s32.totalorder %s115, %s131
      %p133 = scmp.eq.s32.totalorder %s20, 0
      %p134 = por %p132, %p133
      %p135 = scmp.le.s32.totalorder 1, %s14
      %p136 = scmp.lt.s32.totalorder %s14, 3
      %p137 = pnand %p135, %p136
      %p138 = pneg %p137
      // Predicated region
      $region9: #{tpu_custom_call.1} parent=5 // pred_check
        _
      $region10: #{tpu_custom_call.1} parent=5 // pred_check_branch
        %140 = sbr.rel (%p137) target = $region12
      $region11: #{tpu_custom_call.1} parent=5 // pred_region
        %s141 = ssub.s32 %s14, 1
        // Predicated region
        $region13: #{tpu_custom_call.1} parent=11 // pred_check
          %p142 = pneg %p80
        $region14: #{tpu_custom_call.1} parent=11 // pred_check_branch
          %144 = sbr.rel (%p142) target = $region16
        $region15: #{tpu_custom_call.1} parent=11 // pred_region
          %s145 = smul.u32 2, %s23
          %p146 = scmp.lt.s32.totalorder %s145, 1
          %s147 = scalar_select %p146, %s145, 1
          %s148 = smul.addr %s147, 8
          %s149 = scalar_lea.vmem %s1, %s148
          %s150 = smul.u32 2, %s23
        $region16: #{tpu_custom_call.1} parent=11 // pred_fallthru
          _
        // Predicated region
        $region17: #{tpu_custom_call.1} parent=11 // pred_check
          %p151 = pneg %p101
        $region18: #{tpu_custom_call.1} parent=11 // pred_check_branch
          %153 = sbr.rel (%p151) target = $region20
        $region19: #{tpu_custom_call.1} parent=11 // pred_region
          %155 = vsyncadd [#allocation7], 0
          %s156 = sshll.u32 %s2, 4
          %s157 = int_to_ptr.hbm [resolvable:$true] %s156
          %s158 = sshll.u32 [#allocation6], 4
          %s159 = int_to_ptr.vmem [resolvable:$true] %s158
          %164 = dma.hbm_to_vmem [thread:$0]  %s157, 4864, %s159, [#allocation7], 128, 128, 8
        $region20: #{tpu_custom_call.1} parent=11 // pred_fallthru
          _
      $region12: #{tpu_custom_call.1} parent=5 // pred_fallthru
        _
      %p165 = scmp.lt.s32.totalorder %s14, 2
      // Predicated region
      $region21: #{tpu_custom_call.1} parent=5 // pred_check
        %p166 = pneg %p165
      $region22: #{tpu_custom_call.1} parent=5 // pred_check_branch
        %168 = sbr.rel (%p166) target = $region24
      $region23: #{tpu_custom_call.1} parent=5 // pred_region
        // Predicated region
        $region25: #{tpu_custom_call.1} parent=23 // pred_check
          %p169 = pneg %p48
        $region26: #{tpu_custom_call.1} parent=23 // pred_check_branch
          %171 = sbr.rel (%p169) target = $region28
        $region27: #{tpu_custom_call.1} parent=23 // pred_region
          %s172 = sand.u32 %s38, 1
          %s173 = scalar_lea.sflag [#allocation4], %s172
          %s174 = sand.u32 %s38, 1
          %s175 = smul.addr %s174, 64
          %s176 = scalar_lea.vmem [#allocation3], %s175
          %s177 = smul.u32 2, %s21
          %179 = vsyncadd %s173, 0
          %s180 = smul.addr %s177, 8
          %s181 = sadd.s32 %s22, %s180
          %s182 = smul.addr %s181, 8
          %s183 = scalar_lea.hbm %s0, %s182
          %s184 = sshll.u32 %s183, 4
          %s185 = int_to_ptr.hbm [resolvable:$true] %s184
          %s186 = sshll.u32 %s176, 4
          %s187 = int_to_ptr.vmem [resolvable:$true] %s186
          %192 = dma.hbm_to_vmem [thread:$0]  %s185, 1024, %s187, %s173, 256, 128, 8
        $region28: #{tpu_custom_call.1} parent=23 // pred_fallthru
          _
      $region24: #{tpu_custom_call.1} parent=5 // pred_fallthru
        _
      %p193 = scmp.le.s32.totalorder 1, %s14
      %p194 = scmp.lt.s32.totalorder %s14, 3
      %p195 = pnand %p193, %p194
      %p196 = pneg %p195
      // Predicated region
      $region29: #{tpu_custom_call.1} parent=5 // pred_check
        _
      $region30: #{tpu_custom_call.1} parent=5 // pred_check_branch
        %198 = sbr.rel (%p195) target = $region32
      $region31: #{tpu_custom_call.1} parent=5 // pred_region
        %s199 = ssub.s32 %s14, 1
        %s200 = sand.u32 %s41, 1
        %s201 = scalar_lea.sflag [#allocation4], %s200
        %s202 = sand.u32 %s41, 1
        %s203 = smul.addr %s202, 64
        %s204 = scalar_lea.vmem [#allocation3], %s203
        // Predicated region
        $region33: #{tpu_custom_call.1} parent=31 // pred_check
          %p205 = pneg %p54
        $region34: #{tpu_custom_call.1} parent=31 // pred_check_branch
          %207 = sbr.rel (%p205) target = $region36
        $region35: #{tpu_custom_call.1} parent=31 // pred_region
          %209 = dma.done %s201, 1024
        $region36: #{tpu_custom_call.1} parent=31 // pred_fallthru
          _
        // Predicated region
        $region37: #{tpu_custom_call.1} parent=31 // pred_check
          %p210 = pneg %p101
        $region38: #{tpu_custom_call.1} parent=31 // pred_check_branch
          %212 = sbr.rel (%p210) target = $region40
        $region39: #{tpu_custom_call.1} parent=31 // pred_region
          %214 = dma.done [#allocation7], 4864
        $region40: #{tpu_custom_call.1} parent=31 // pred_fallthru
          _
        %s215 = sand.u32 %s41, 1
        %s216 = scalar_lea.sflag [#allocation4], %s215
        %s217 = sand.u32 %s41, 1
        %s218 = smul.addr %s217, 64
        %s219 = scalar_lea.vmem [#allocation3], %s218
        %p220 = pneg %p54
        %p221 = pneg %p51
        %s222 = smul.u32 2, %s23
        %p223 = scmp.lt.s32.totalorder %s222, 1
        %s224 = scalar_select %p223, %s222, 1
        %s225 = smul.addr %s224, 8
        %s226 = scalar_lea.vmem %s1, %s225
        %p227 = pneg %p80
        %p228 = pneg %p77
        %p229 = pneg %p101
        %p230 = pneg %p98
        %p231 = pneg %p127
        %p232 = pneg %p124
        %s233 = smul.u32 2, %s23
        %s234 = smul.u32 2, %s23
        %p235 = scmp.lt.s32.totalorder %s234, 1
        %s236 = scalar_select %p235, %s234, 1
        %s237 = smul.addr %s236, 8
        %s238 = scalar_lea.vmem %s1, %s237
        %s239 = smul.u32 2, %s23
        %s240 = smul.u32 2, %s23
        %p241 = scmp.eq.s32.totalorder %s24, 0
        // Predicated region
        $region41: #{tpu_custom_call.1} parent=31 // pred_check
          %p242 = pneg %p241
        $region42: #{tpu_custom_call.1} parent=31 // pred_check_branch
          %244 = sbr.rel (%p242) target = $region44
        $region43: #{tpu_custom_call.1} parent=31 // pred_region
          %vm245 = vcmask 254976
          %246 = vst.msk [vmem:[#allocation2] sm:$0x3] %vm245, 0.0
        $region44: #{tpu_custom_call.1} parent=31 // pred_fallthru
          _
        %v247 = vld [vmem:[#allocation2] sm:$0x3]
        %v248 = vld [vmem:[%s204] sm:$0xff]
        %v249 = vld [vmem:[%s204 + $0x8] sm:$0xff]
        %v250 = vld [vmem:[%s204 + $0x10] sm:$0xff]
        %v251 = vld [vmem:[%s204 + $0x18] sm:$0xff]
        %v252 = vld [vmem:[%s204 + $0x20] sm:$0xff]
        %v253 = vld [vmem:[%s204 + $0x28] sm:$0xff]
        %v254 = vld [vmem:[%s204 + $0x30] sm:$0xff]
        %v255 = vld [vmem:[%s204 + $0x38] sm:$0xff]
        %256 = vadd.xlane.f32.xlu0 %v248
        %v257 = vpop.xlane.xlu0 %256
        %258 = vadd.xlane.f32.xlu0 %v249
        %v259 = vpop.xlane.xlu0 %258
        %260 = vadd.xlane.f32.xlu0 %v250
        %v261 = vpop.xlane.xlu0 %260
        %262 = vadd.xlane.f32.xlu0 %v251
        %v263 = vpop.xlane.xlu0 %262
        %264 = vadd.xlane.f32.xlu0 %v252
        %v265 = vpop.xlane.xlu0 %264
        %266 = vadd.xlane.f32.xlu0 %v253
        %v267 = vpop.xlane.xlu0 %266
        %268 = vadd.xlane.f32.xlu0 %v254
        %v269 = vpop.xlane.xlu0 %268
        %270 = vadd.xlane.f32.xlu0 %v255
        %v271 = vpop.xlane.xlu0 %270
        %v280 = vlaneseq
        %v281 = vand.u32 %v280, 127
        %v282 = vperm.slane %v257, %v281
        %v283 = vadd.s32 %v281, 4294967288
        %v284 = vperm.slane %v259, %v283
        %vm285 = vcmask 130112
        %v286 = vsel %vm285, %v284, %v282
        %v287 = vadd.s32 %v281, 4294967280
        %v288 = vperm.slane %v261, %v287
        %vm289 = vcmask 195712
        %v290 = vsel %vm289, %v288, %v286
        %v291 = vadd.s32 %v281, 4294967272
        %v292 = vperm.slane %v263, %v291
        %vm293 = vcmask 261312
        %v294 = vsel %vm293, %v292, %v290
        %v295 = vperm.slane %v265, %v281
        %v296 = vperm.slane %v267, %v283
        %v297 = vsel %vm285, %v296, %v295
        %v298 = vperm.slane %v269, %v287
        %v299 = vsel %vm289, %v298, %v297
        %v300 = vperm.slane %v271, %v291
        %v301 = vsel %vm293, %v300, %v299
        %vm302 = vcmask 1041409
        %v303 = vsel %vm302, %v301, %v294
        %v305 = vadd.f32 %v247, %v303
        %vm306 = vcmask 254976
        %307 = vst.msk [vmem:[#allocation2] sm:$0x3] %vm306, %v305
        %p308 = scmp.eq.s32.totalorder %s24, 1
        // Predicated region
        $region45: #{tpu_custom_call.1} parent=31 // pred_check
          %p309 = pneg %p308
        $region46: #{tpu_custom_call.1} parent=31 // pred_check_branch
          %311 = sbr.rel (%p309) target = $region48
        $region47: #{tpu_custom_call.1} parent=31 // pred_region
          %v312 = vld [vmem:[#allocation6] sm:$0xff]
          %v313 = vld [vmem:[#allocation6 + $0x8] sm:$0xff]
          %v314 = vld [vmem:[#allocation6 + $0x10] sm:$0xff]
          %v315 = vld [vmem:[#allocation6 + $0x18] sm:$0xff]
          %v316 = vld [vmem:[#allocation6 + $0x20] sm:$0xff]
          %v317 = vld [vmem:[#allocation6 + $0x28] sm:$0xff]
          %v318 = vld [vmem:[#allocation6 + $0x30] sm:$0xff]
          %v319 = vld [vmem:[#allocation6 + $0x38] sm:$0xff]
          %v320 = vld [vmem:[#allocation6 + $0x40] sm:$0xff]
          %v321 = vld [vmem:[#allocation6 + $0x48] sm:$0xff]
          %v322 = vld [vmem:[#allocation6 + $0x50] sm:$0xff]
          %v323 = vld [vmem:[#allocation6 + $0x58] sm:$0xff]
          %v324 = vld [vmem:[#allocation6 + $0x60] sm:$0xff]
          %v325 = vld [vmem:[#allocation6 + $0x68] sm:$0xff]
          %v326 = vld [vmem:[#allocation6 + $0x70] sm:$0xff]
          %v327 = vld [vmem:[#allocation6 + $0x78] sm:$0xff]
          %v328 = vld [vmem:[#allocation6 + $0x80] sm:$0xff]
          %v329 = vld [vmem:[#allocation6 + $0x88] sm:$0xff]
          %v330 = vld [vmem:[#allocation6 + $0x90] sm:$0xff]
          %v331 = vld [vmem:[#allocation6 + $0x98] sm:$0xff]
          %v332 = vld [vmem:[#allocation6 + $0xa0] sm:$0xff]
          %v333 = vld [vmem:[#allocation6 + $0xa8] sm:$0xff]
          %v334 = vld [vmem:[#allocation6 + $0xb0] sm:$0xff]
          %v335 = vld [vmem:[#allocation6 + $0xb8] sm:$0xff]
          %v336 = vld [vmem:[#allocation6 + $0xc0] sm:$0xff]
          %v337 = vld [vmem:[#allocation6 + $0xc8] sm:$0xff]
          %v338 = vld [vmem:[#allocation6 + $0xd0] sm:$0xff]
          %v339 = vld [vmem:[#allocation6 + $0xd8] sm:$0xff]
          %v340 = vld [vmem:[#allocation6 + $0xe0] sm:$0xff]
          %v341 = vld [vmem:[#allocation6 + $0xe8] sm:$0xff]
          %v342 = vld [vmem:[#allocation6 + $0xf0] sm:$0xff]
          %v343 = vld [vmem:[#allocation6 + $0xf8] sm:$0xff]
          %v344 = vld [vmem:[#allocation6 + $0x100] sm:$0xff]
          %v345 = vld [vmem:[#allocation6 + $0x108] sm:$0xff]
          %v346 = vld [vmem:[#allocation6 + $0x110] sm:$0xff]
          %v347 = vld [vmem:[#allocation6 + $0x118] sm:$0xff]
          %v348 = vld [vmem:[#allocation6 + $0x120] sm:$0xff]
          %v349 = vld [vmem:[#allocation6 + $0x128] sm:$0xff]
          %v350 = vld [vmem:[#allocation2] sm:$0x3]
          %vm351 = vcmask 261120
          %v353 = vsel %vm351, %v350, 0
          %355 = vmatpush.msra.mxu0 0.0
          %356 = vmatpush.msra.mxu0 0.0
          %357 = vmatpush.msra.mxu0 0.0
          %358 = vmatpush.msra.mxu0 0.0
          %359 = vmatpush.msra.mxu0 0.0
          %360 = vmatpush.msra.mxu0 0.0
          %361 = vmatpush.msra.mxu0 0.0
          %362 = vmatpush.msra.mxu0 0.0
          %363 = vmatpush.msra.mxu0 0.0
          %364 = vmatpush.msra.mxu0 0.0
          %365 = vmatpush.msra.mxu0 0.0
          %366 = vmatpush.msra.mxu0 0.0
          %367 = vmatpush.msra.mxu0 %v315
          %368 = vmatpush.msra.mxu0 %v314
          %369 = vmatpush.msra.mxu0 %v313
          %370 = vmatpush.msra.mxu0 %v312
          %371 = vmatmul.f32.gmra.mxu0 %v353
          %v372 = vpop.f32.mrf.mxu0
          %v373 = vadd.f32 0.0, %v372
          %374 = vdwg.mxu0
          %v375 = vld [vmem:[%s238] sm:$0xff]
          %v376 = vld [vmem:[%s238 + $0x8] sm:$0xff]
          %378 = vset.pattern.permute.xlu0 0
          %379 = vperm.xlu0 %378, %v375
          %v380 = vpop.permute.xlu0 %379
          %383 = vset.pattern.permute.xlu0 0
          %384 = vperm.xlu0 %383, %v376
          %v385 = vpop.permute.xlu0 %384
          %v387 = vperm.slane %v316, 0
          %v388 = vmul.f32 %v380, %v387
          %v389 = vmul.f32 %v385, %v387
          %390 = vset.pattern.permute.xlu0 1
          %391 = vperm.xlu0 %390, %v375
          %v392 = vpop.permute.xlu0 %391
          %394 = vset.pattern.permute.xlu0 1
          %395 = vperm.xlu0 %394, %v376
          %v396 = vpop.permute.xlu0 %395
          %v398 = vperm.slane %v316, 1
          %v399 = vmul.f32 %v392, %v398
          %v400 = vmul.f32 %v396, %v398
          %v401 = vadd.f32 %v388, %v399
          %v402 = vadd.f32 %v389, %v400
          %403 = vset.pattern.permute.xlu0 2
          %404 = vperm.xlu0 %403, %v375
          %v405 = vpop.permute.xlu0 %404
          %407 = vset.pattern.permute.xlu0 2
          %408 = vperm.xlu0 %407, %v376
          %v409 = vpop.permute.xlu0 %408
          %v411 = vperm.slane %v316, 2
          %v412 = vmul.f32 %v405, %v411
          %v413 = vmul.f32 %v409, %v411
          %v414 = vadd.f32 %v401, %v412
          %v415 = vadd.f32 %v402, %v413
          %416 = vset.pattern.permute.xlu0 3
          %417 = vperm.xlu0 %416, %v375
          %v418 = vpop.permute.xlu0 %417
          %420 = vset.pattern.permute.xlu0 3
          %421 = vperm.xlu0 %420, %v376
          %v422 = vpop.permute.xlu0 %421
          %v424 = vperm.slane %v316, 3
          %v425 = vmul.f32 %v418, %v424
          %v426 = vmul.f32 %v422, %v424
          %v427 = vadd.f32 %v414, %v425
          %v428 = vadd.f32 %v415, %v426
          %v430 = vrot.slane %v373, 1
          %v431 = vperm.slane %v373, 0
          %v432 = vperm.slane %v430, 0
          %v435 = vadd.f32 %v431, %v427
          %v436 = vadd.f32 %v432, %v428
          %v437 = vperm.slane %v317, 0
          %v438 = vadd.f32 %v435, %v437
          %v439 = vadd.f32 %v436, %v437
          %v440 = vmax.f32 %v438, 0.0
          %v441 = vmax.f32 %v439, 0.0
          %v442 = vperm.slane %v317, 1
          %443 = vmatpush.msra.mxu0 %v333
          %444 = vmatpush.msra.mxu0 %v332
          %445 = vmatpush.msra.mxu0 %v331
          %446 = vmatpush.msra.mxu0 %v330
          %447 = vmatpush.msra.mxu0 %v329
          %448 = vmatpush.msra.mxu0 %v328
          %449 = vmatpush.msra.mxu0 %v327
          %450 = vmatpush.msra.mxu0 %v326
          %451 = vmatpush.msra.mxu0 %v325
          %452 = vmatpush.msra.mxu0 %v324
          %453 = vmatpush.msra.mxu0 %v323
          %454 = vmatpush.msra.mxu0 %v322
          %455 = vmatpush.msra.mxu0 %v321
          %456 = vmatpush.msra.mxu0 %v320
          %457 = vmatpush.msra.mxu0 %v319
          %458 = vmatpush.msra.mxu0 %v318
          %459 = vmatmul.f32.gmra.mxu0 %v440
          %v460 = vpop.f32.mrf.mxu0
          %v461 = vadd.f32 %v442, %v460
          %462 = vmatmul.f32.gmra.mxu0 %v441
          %v463 = vpop.f32.mrf.mxu0
          %v464 = vadd.f32 %v442, %v463
          %465 = vdwg.mxu0
          %v466 = vmax.f32 %v461, 0.0
          %v467 = vmax.f32 %v464, 0.0
          %v468 = vperm.slane %v317, 2
          %469 = vmatpush.msra.mxu0 %v349
          %470 = vmatpush.msra.mxu0 %v348
          %471 = vmatpush.msra.mxu0 %v347
          %472 = vmatpush.msra.mxu0 %v346
          %473 = vmatpush.msra.mxu0 %v345
          %474 = vmatpush.msra.mxu0 %v344
          %475 = vmatpush.msra.mxu0 %v343
          %476 = vmatpush.msra.mxu0 %v342
          %477 = vmatpush.msra.mxu0 %v341
          %478 = vmatpush.msra.mxu0 %v340
          %479 = vmatpush.msra.mxu0 %v339
          %480 = vmatpush.msra.mxu0 %v338
          %481 = vmatpush.msra.mxu0 %v337
          %482 = vmatpush.msra.mxu0 %v336
          %483 = vmatpush.msra.mxu0 %v335
          %484 = vmatpush.msra.mxu0 %v334
          %485 = vmatmul.f32.gmra.mxu0 %v466
          %v486 = vpop.f32.mrf.mxu0
          %v487 = vadd.f32 %v468, %v486
          %488 = vmatmul.f32.gmra.mxu0 %v467
          %v489 = vpop.f32.mrf.mxu0
          %v490 = vadd.f32 %v468, %v489
          %491 = vdwg.mxu0
          %492 = vst [vmem:[#allocation8] sm:$0xff] %v487
          %493 = vst [vmem:[#allocation8 + $0x8] sm:$0xff] %v490
        $region48: #{tpu_custom_call.1} parent=31 // pred_fallthru
          _
        // Predicated region
        $region49: #{tpu_custom_call.1} parent=31 // pred_check
          %p494 = pneg %p124
        $region50: #{tpu_custom_call.1} parent=31 // pred_check_branch
          %496 = sbr.rel (%p494) target = $region52
        $region51: #{tpu_custom_call.1} parent=31 // pred_region
          %s497 = smul.u32 2, %s23
          %499 = vsyncadd [#allocation5], 0
          %s500 = smul.addr %s497, 8
          %s501 = scalar_lea.hbm %s3, %s500
          %s502 = sshll.u32 [#allocation8], 4
          %s503 = int_to_ptr.vmem [resolvable:$true] %s502
          %s504 = sshll.u32 %s501, 4
          %s505 = int_to_ptr.hbm [resolvable:$true] %s504
          %510 = dma.vmem_to_hbm [thread:$0]  %s503, 256, %s505, [#allocation5], 128, 128, 8
        $region52: #{tpu_custom_call.1} parent=31 // pred_fallthru
          _
        // Predicated region
        $region53: #{tpu_custom_call.1} parent=31 // pred_check
          %p511 = pneg %p124
        $region54: #{tpu_custom_call.1} parent=31 // pred_check_branch
          %513 = sbr.rel (%p511) target = $region56
        $region55: #{tpu_custom_call.1} parent=31 // pred_region
          %515 = dma.done [#allocation5], 256
        $region56: #{tpu_custom_call.1} parent=31 // pred_fallthru
          _
      $region32: #{tpu_custom_call.1} parent=5 // pred_fallthru
        _
      %p516 = scmp.le.s32.totalorder 2, %s14
      // Predicated region
      $region57: #{tpu_custom_call.1} parent=5 // pred_check
        %p517 = pneg %p516
      $region58: #{tpu_custom_call.1} parent=5 // pred_check_branch
        %519 = sbr.rel (%p517) target = $region60
      $region59: #{tpu_custom_call.1} parent=5 // pred_region
        %s520 = ssub.s32 %s14, 2
      $region60: #{tpu_custom_call.1} parent=5 // pred_fallthru
        _
    $region6: #{tpu_custom_call.1} parent=1 // loop_footer
      %s18 = sadd.s32 1, %s14
    $region7: #{tpu_custom_call.1} parent=1 // loop_footer_branch
      %13 = sbr.rel target = $region3
    $region8: #{tpu_custom_call.1} parent=1 // loop_exit
      _
    %521 = vsyncpa [#allocation4], 1
    %s522 = scalar_lea.sflag [#allocation4], 1
    %523 = vsyncpa %s522, 1
    %524 = vsyncpa [#allocation7], 1
    %525 = vsyncpa [#allocation5], 1
    %s526 = scalar_lea.sflag [#allocation5], 1
    %527 = vsyncpa %s526, 1

</llo_original>
